<compile_context>
chip_gen: v6e
topology: v6e:2x2x1
jax: 0.10.0
libtpu: 0.0.40
codegen_flags: <defaults>
</compile_context>

<pallas_src>
import functools

import jax
import jax.numpy as jnp
from jax.experimental import pallas as pl
from jax.experimental.pallas import tpu as pltpu


_SUBLANE_MULTIPLE = {4: 8, 2: 16, 1: 32}  # itemsize -> minimum sublane tile


def _ls_ce_kernel(x_ref, label_ref, weight_ref, out_ref, *, confidence, smoothing, n_rows):
    # x_ref:      (TN, C)   logits tile (native dtype; cast to f32 here)
    # label_ref:  (TN, 1)   int32 target class per row
    # weight_ref: (TN, 1)   f32 per-sample weight
    # out_ref:    (1, 1, 1) f32 partial sum of weighted per-sample losses for this tile
    x = x_ref[...].astype(jnp.float32)                               # (TN, C)
    tn, c = x.shape
    lab = label_ref[...]                                             # (TN, 1)
    w = weight_ref[...].astype(jnp.float32)                          # (TN, 1)

    # Valid-row mask: x is NOT padded in HBM, so tail rows of the last tile hold unspecified
    # data.  Use jnp.where (select) so NaN/Inf garbage cannot propagate into the tile sum.
    row_ids = pl.program_id(0) * tn + jax.lax.broadcasted_iota(jnp.int32, (tn, 1), 0)
    valid = row_ids < n_rows                                         # (TN, 1)

    # Numerically stable log-sum-exp over classes.
    m = jnp.max(x, axis=-1, keepdims=True)                           # (TN, 1)
    sum_exp = jnp.sum(jnp.exp(x - m), axis=-1, keepdims=True)        # (TN, 1)
    lse = m + jnp.log(sum_exp)                                       # (TN, 1)

    # Fused label-smoothing CE (uses confidence + smoothing == 1):
    #   loss = lse - (smoothing / C) * sum_c x - confidence * x[label]
    sum_x = jnp.sum(x, axis=-1, keepdims=True)                       # (TN, 1)
    class_iota = jax.lax.broadcasted_iota(jnp.int32, (tn, c), 1)     # (TN, C)
    x_at_label = jnp.sum(jnp.where(class_iota == lab, x, 0.0),
                         axis=-1, keepdims=True)                     # (TN, 1)

    loss = lse - (smoothing / c) * sum_x - confidence * x_at_label   # (TN, 1)
    per_sample = jnp.where(valid, loss * w, 0.0)                     # (TN, 1)

    out_ref[...] = jnp.sum(per_sample, keepdims=True).reshape(1, 1, 1)


def _round_up(a, b):
    return -(-a // b) * b


def _vmem_estimate(tn, c, itemsize):
    """Conservative in-kernel VMEM footprint for a (tn, c) row tile."""
    x_bufs = 2 * tn * c * itemsize          # double-buffered native-dtype input tile
    side = 2 * 2 * tn * 128 * 4             # (tn,1) label + weight: lane-padded, double-buffered
    temps = 4 * tn * c * 4                  # f32 pass-boundary temporaries (cast/exp/select/...)
    out = 2 * 8 * 128 * 4                   # tiny output block
    return x_bufs + side + temps + out


def _pick_tile_rows(n, c, x_dtype, vmem_budget=20 << 20, target_x_bytes=2 << 20):
    """Row tile sized by bytes, dtype-aware sublane multiple, megacore- and VMEM-safe."""
    itemsize = jnp.dtype(x_dtype).itemsize
    sub = _SUBLANE_MULTIPLE.get(itemsize, 8)

    # ~2 MiB of logits per buffer (or the whole batch if smaller).
    tn = max(sub, target_x_bytes // max(1, c * itemsize))
    tn = min(tn, _round_up(n, sub))
    tn = _round_up(tn, sub)

    # Keep >= ~4 grid steps when the batch allows it, so v7x's 2 TCs can split the
    # "parallel" axis (harmless on single-TC v5e/v6e).
    if n >= 4 * sub:
        tn = min(tn, _round_up(-(-n // 4), sub))

    # Shrink until the estimated footprint (f32 temporaries + lane-padded side inputs
    # included) fits a cross-generation budget.
    while tn > sub and _vmem_estimate(tn, c, itemsize) > vmem_budget:
        tn = max(sub, _round_up(tn // 2, sub))

    return tn


def label_smoothing_cross_entropy(x, label, smoothing=0.0, weight=None, avg_factor=None,
                                  tile_rows=None):
    """Forward pass of LabelSmoothingCrossEntropyLoss (reduction='mean')."""
    n, c = x.shape
    confidence = 1.0 - smoothing

    if weight is None:
        weight = jnp.ones((n,), dtype=jnp.float32)
    weight = weight.astype(jnp.float32)
    label = label.astype(jnp.int32)

    itemsize = jnp.dtype(x.dtype).itemsize
    sub = _SUBLANE_MULTIPLE.get(itemsize, 8)
    tn = tile_rows if tile_rows is not None else _pick_tile_rows(n, c, x.dtype)
    assert tn % sub == 0, f"tile_rows must be a multiple of {sub} for dtype {x.dtype}"

    n_tiles = -(-n // tn)  # cdiv; ragged tail handled by in-kernel masking (no jnp.pad of x)

    label2 = label.reshape(n, 1)
    weight2 = weight.reshape(n, 1)

    kernel = functools.partial(_ls_ce_kernel, confidence=confidence, smoothing=smoothing,
                               n_rows=n)

    vmem_limit = int(min(64 << 20, max(24 << 20, (_vmem_estimate(tn, c, itemsize) * 3) // 2)))

    cost = pl.CostEstimate(
        flops=10 * n * c,
        transcendentals=n * c,
        bytes_accessed=n * c * itemsize + n * 8 + n_tiles * 4,
    )

    partial_sums = pl.pallas_call(
        kernel,
        out_shape=jax.ShapeDtypeStruct((n_tiles, 1, 1), jnp.float32),
        grid_spec=pltpu.PrefetchScalarGridSpec(
            num_scalar_prefetch=0,
            grid=(n_tiles,),
            in_specs=[
                pl.BlockSpec((tn, c), lambda i: (i, 0)),
                pl.BlockSpec((tn, 1), lambda i: (i, 0)),
                pl.BlockSpec((tn, 1), lambda i: (i, 0)),
            ],
            out_specs=pl.BlockSpec((1, 1, 1), lambda i: (i, 0, 0)),
        ),
        compiler_params=pltpu.CompilerParams(
            dimension_semantics=("parallel",),
            vmem_limit_bytes=vmem_limit,
        ),
        cost_estimate=cost,
    )(x, label2, weight2)

    total = jnp.sum(partial_sums)

    # weight_reduce_loss(..., reduction='mean', avg_factor=avg_factor)
    if avg_factor is None:
        return total / n
    return total / avg_factor


def _reference(x, label, smoothing, weight=None, avg_factor=None):
    """Pure-JAX reference mirroring the PyTorch forward."""
    confidence = 1.0 - smoothing
    logprobs = jax.nn.log_softmax(x.astype(jnp.float32), axis=-1)
    nll = -jnp.take_along_axis(logprobs, label[:, None].astype(jnp.int32), axis=-1)[:, 0]
    smooth = -jnp.mean(logprobs, axis=-1)
    loss = confidence * nll + smoothing * smooth
    if weight is not None:
        loss = loss * weight.astype(jnp.float32)
    if avg_factor is None:
        return jnp.mean(loss)
    return jnp.sum(loss) / avg_factor


if __name__ == "__main__":
    key = jax.random.PRNGKey(0)
    kx, kl, kw = jax.random.split(key, 3)

    num_classes = 32
    smoothing = 0.1

    # 1) default call (weight=None, avg_factor=None), single tile, exact-fit batch
    n = 16
    x = jax.random.normal(kx, (n, num_classes), dtype=jnp.float32)
    label = jax.random.randint(kl, (n,), 0, num_classes, dtype=jnp.int32)

    loss = label_smoothing_cross_entropy(x, label, smoothing=smoothing)
    jax.block_until_ready(loss)
    ref = _reference(x, label, smoothing)
    assert jnp.allclose(loss, ref, atol=1e-5, rtol=1e-5), (loss, ref)

    # 2) weighted call with avg_factor, ragged batch, forced small tile -> multi-tile grid
    #    with in-kernel tail masking (no jnp.pad of x)
    n2 = 20
    x2 = jax.random.normal(kx, (n2, num_classes), dtype=jnp.float32)
    label2 = jax.random.randint(kl, (n2,), 0, num_classes, dtype=jnp.int32)
    weight2 = jax.random.uniform(kw, (n2,), dtype=jnp.float32)

    loss_w = label_smoothing_cross_entropy(
        x2, label2, smoothing=smoothing, weight=weight2, avg_factor=12.0, tile_rows=8
    )
    jax.block_until_ready(loss_w)
    ref_w = _reference(x2, label2, smoothing, weight=weight2, avg_factor=12.0)
    assert jnp.allclose(loss_w, ref_w, atol=1e-5, rtol=1e-5), (loss_w, ref_w)

    # 3) bf16 logits, ragged batch, auto tile picker (dtype-aware 16-row multiple + masking)
    n3 = 40
    x3 = jax.random.normal(kx, (n3, num_classes), dtype=jnp.bfloat16)
    label3 = jax.random.randint(kl, (n3,), 0, num_classes, dtype=jnp.int32)

    loss_bf16 = label_smoothing_cross_entropy(x3, label3, smoothing=smoothing)
    jax.block_until_ready(loss_bf16)
    ref_bf16 = _reference(x3, label3, smoothing)
    assert jnp.allclose(loss_bf16, ref_bf16, atol=1e-4, rtol=1e-4), (loss_bf16, ref_bf16)

    print("KERNEL_OK")
</pallas_src>

<mosaic_0001>
module attributes {stable_mosaic.version = 11 : i64} {
  func.func @_ls_ce_kernel(%arg0: i32, %arg1: memref<16x32xf32, #tpu.memory_space<vmem>>, %arg2: memref<16x1xi32, #tpu.memory_space<vmem>>, %arg3: memref<16x1xf32, #tpu.memory_space<vmem>>, %arg4: memref<1x1x1xf32, #tpu.memory_space<vmem>>) attributes {dimension_semantics = [#tpu.dimension_semantics<parallel>], iteration_bounds = array<i64: 1>, scalar_prefetch = 0 : i64, scratch_operands = 0 : i64, tpu.core_type = #tpu.core_type<tc>, window_params = [{transform_indices = @transform_0, window_bounds = array<i64: 16, 32>}, {transform_indices = @transform_1, window_bounds = array<i64: 16, 1>}, {transform_indices = @transform_2, window_bounds = array<i64: 16, 1>}, {transform_indices = @transform_3, window_bounds = array<i64: 1, 1, 1>}]} {
    %c0 = arith.constant 0 : index
    %c0_0 = arith.constant 0 : index
    %0 = vector.load %arg1[%c0, %c0_0] : memref<16x32xf32, #tpu.memory_space<vmem>>, vector<16x32xf32>
    %c0_1 = arith.constant 0 : index
    %c0_2 = arith.constant 0 : index
    %1 = vector.load %arg2[%c0_1, %c0_2] : memref<16x1xi32, #tpu.memory_space<vmem>>, vector<16x1xi32>
    %c0_3 = arith.constant 0 : index
    %c0_4 = arith.constant 0 : index
    %2 = vector.load %arg3[%c0_3, %c0_4] : memref<16x1xf32, #tpu.memory_space<vmem>>, vector<16x1xf32>
    %c16_i32 = arith.constant 16 : i32
    %3 = arith.muli %arg0, %c16_i32 : i32
    %4 = tpu.iota {dimensions = array<i32: 0>} : vector<16x1xi32>
    %5 = vector.broadcast %3 : i32 to vector<16x1xi32>
    %6 = arith.addi %5, %4 : vector<16x1xi32>
    %c16_i32_5 = arith.constant 16 : i32
    %7 = vector.broadcast %c16_i32_5 : i32 to vector<16x1xi32>
    %8 = arith.cmpi slt, %6, %7 : vector<16x1xi32>
    %cst = arith.constant dense<0xFF800000> : vector<16xf32>
    %9 = vector.multi_reduction <maximumf>, %0, %cst [1] : vector<16x32xf32> to vector<16xf32>
    %10 = vector.shape_cast %9 : vector<16xf32> to vector<16x1xf32>
    %11 = vector.broadcast %10 : vector<16x1xf32> to vector<16x32xf32>
    %12 = arith.subf %0, %11 : vector<16x32xf32>
    %13 = math.exp %12 : vector<16x32xf32>
    %cst_6 = arith.constant dense<0.000000e+00> : vector<16xf32>
    %14 = vector.multi_reduction <add>, %13, %cst_6 [1] : vector<16x32xf32> to vector<16xf32>
    %15 = vector.shape_cast %14 : vector<16xf32> to vector<16x1xf32>
    %16 = math.log %15 : vector<16x1xf32>
    %17 = arith.addf %10, %16 : vector<16x1xf32>
    %cst_7 = arith.constant dense<0.000000e+00> : vector<16xf32>
    %18 = vector.multi_reduction <add>, %0, %cst_7 [1] : vector<16x32xf32> to vector<16xf32>
    %19 = vector.shape_cast %18 : vector<16xf32> to vector<16x1xf32>
    %20 = tpu.iota {dimensions = array<i32: 1>} : vector<16x32xi32>
    %21 = vector.broadcast %1 : vector<16x1xi32> to vector<16x32xi32>
    %22 = arith.cmpi eq, %20, %21 : vector<16x32xi32>
    %cst_8 = arith.constant 0.000000e+00 : f32
    %23 = vector.broadcast %cst_8 : f32 to vector<16x32xf32>
    %24 = arith.select %22, %0, %23 : vector<16x32xi1>, vector<16x32xf32>
    %cst_9 = arith.constant dense<0.000000e+00> : vector<16xf32>
    %25 = vector.multi_reduction <add>, %24, %cst_9 [1] : vector<16x32xf32> to vector<16xf32>
    %26 = vector.shape_cast %25 : vector<16xf32> to vector<16x1xf32>
    %cst_10 = arith.constant 3.125000e-03 : f32
    %27 = vector.broadcast %cst_10 : f32 to vector<16x1xf32>
    %28 = arith.mulf %27, %19 : vector<16x1xf32>
    %29 = arith.subf %17, %28 : vector<16x1xf32>
    %cst_11 = arith.constant 0.899999976 : f32
    %30 = vector.broadcast %cst_11 : f32 to vector<16x1xf32>
    %31 = arith.mulf %30, %26 : vector<16x1xf32>
    %32 = arith.subf %29, %31 : vector<16x1xf32>
    %33 = arith.mulf %32, %2 : vector<16x1xf32>
    %cst_12 = arith.constant 0.000000e+00 : f32
    %34 = vector.broadcast %cst_12 : f32 to vector<16x1xf32>
    %35 = arith.select %8, %33, %34 : vector<16x1xi1>, vector<16x1xf32>
    %36 = vector.shape_cast %35 : vector<16x1xf32> to vector<1x16x1xf32>
    %cst_13 = arith.constant dense<0.000000e+00> : vector<1xf32>
    %37 = vector.multi_reduction <add>, %36, %cst_13 [1, 2] : vector<1x16x1xf32> to vector<1xf32>
    %38 = vector.shape_cast %37 : vector<1xf32> to vector<1x1x1xf32>
    %39 = vector.extract %38[0, 0, 0] : f32 from vector<1x1x1xf32>
    %40 = vector.broadcast %39 : f32 to vector<1x1xf32>
    %41 = vector.shape_cast %40 : vector<1x1xf32> to vector<1x1x1xf32>
    %c0_14 = arith.constant 0 : index
    %c0_15 = arith.constant 0 : index
    %c0_16 = arith.constant 0 : index
    %42 = vector.load %arg4[%c0_14, %c0_15, %c0_16] : memref<1x1x1xf32, #tpu.memory_space<vmem>>, vector<1x1x1xf32>
    tpu.vector_store %arg4[%c0_14, %c0_15, %c0_16], %41 {strides = array<i32>} : memref<1x1x1xf32, #tpu.memory_space<vmem>>, vector<1x1x1xf32>,
    return
  }
  func.func @transform_0(%arg0: i32) -> (i32, i32) {
    %c0_i32 = arith.constant 0 : i32
    %c0_i32_0 = arith.constant 0 : i32
    return %arg0, %c0_i32 : i32, i32
  }
  func.func @transform_1(%arg0: i32) -> (i32, i32) {
    %c0_i32 = arith.constant 0 : i32
    %c0_i32_0 = arith.constant 0 : i32
    return %arg0, %c0_i32 : i32, i32
  }
  func.func @transform_2(%arg0: i32) -> (i32, i32) {
    %c0_i32 = arith.constant 0 : i32
    %c0_i32_0 = arith.constant 0 : i32
    return %arg0, %c0_i32 : i32, i32
  }
  func.func @transform_3(%arg0: i32) -> (i32, i32, i32) {
    %c0_i32 = arith.constant 0 : i32
    %c0_i32_0 = arith.constant 0 : i32
    %c0_i32_1 = arith.constant 0 : i32
    return %arg0, %c0_i32, %c0_i32_0 : i32, i32, i32
  }
}

</mosaic_0001>

<llo_original>
// kernel: tpu_custom_call.1
$region0: #{tpu_custom_call.1}
  #allocation0 [shape = 'u32[]', space=smem, size = 0x4, offset = 0x4, fixed_abs, tag = 'smem constant byte address 0x4 - core index']
  #allocation1 [shape = 'u32[144,128]{1,0:T(1,128)}', space=vmem, size = 0x12000, scoped, tag = 'internal scratch']
  %s0 = inlined_call_operand.vmem [shape: f32[16,32], index: 0, kind: input, shape index: {}]
  %s1 = inlined_call_operand.vmem [shape: s32[16,1], index: 1, kind: input, shape index: {}]
  %s2 = inlined_call_operand.vmem [shape: f32[16,1], index: 2, kind: input, shape index: {}]
  %s3 = inlined_call_operand.hbm [shape: f32[1,1,1], index: 3, kind: output, shape index: {}]
  %s4 = sld [smem:[#allocation0]]
  $region22: #{tpu_custom_call.1} parent=0
    _
  %s6 = ssub.s32 1, %s4
  %s7 = scalar_select 0, %s6, %s4
  $region1: #{tpu_custom_call.1} parent=0
    #allocation2 [shape = 'u8[512]{0}', space=vmem, size = 0x400, scoped, tag = 'output window, operand 0, single buffered']
    #allocation3 [shape = 's32[1]{0}', space=sflag, size = 0x4, scoped, tag = 'scoped memory for tpu_custom_call.1']
    %8 = vsyncpa [#allocation3], 0
    // Predicated region
    $region2: #{tpu_custom_call.1} parent=1 // pred_check
      _
    $region3: #{tpu_custom_call.1} parent=1 // pred_check_branch
      %10 = sbr.rel (0) target = $region5
    $region4: #{tpu_custom_call.1} parent=1 // pred_region
      _
    $region5: #{tpu_custom_call.1} parent=1 // pred_fallthru
      _
    // Predicated region
    $region6: #{tpu_custom_call.1} parent=1 // pred_check
      _
    $region7: #{tpu_custom_call.1} parent=1 // pred_check_branch
      %12 = sbr.rel (0) target = $region9
    $region8: #{tpu_custom_call.1} parent=1 // pred_region
      _
    $region9: #{tpu_custom_call.1} parent=1 // pred_fallthru
      _
    // Predicated region
    $region10: #{tpu_custom_call.1} parent=1 // pred_check
      _
    $region11: #{tpu_custom_call.1} parent=1 // pred_check_branch
      %14 = sbr.rel (0) target = $region13
    $region12: #{tpu_custom_call.1} parent=1 // pred_region
      _
    $region13: #{tpu_custom_call.1} parent=1 // pred_fallthru
      _
    %v15 = vld [vmem:[%s0] sm:$0xff]
    %v16 = vld [vmem:[%s0 + $0x8] sm:$0xff]
    %v17 = vld [vmem:[%s1] sm:$0xff]
    %v18 = vld [vmem:[%s1 + $0x8] sm:$0xff]
    %v19 = vld [vmem:[%s2] sm:$0xff]
    %v20 = vld [vmem:[%s2 + $0x8] sm:$0xff]
    %s21 = smul.u32 0, 16
    %v22 = vlaneseq
    %v23 = vshrl.u32 %v22, 7
    %v24 = vadd.s32 %v23, 8
    %v25 = vstv %s21
    %v26 = vadd.s32 %v25, %v23
    %v27 = vadd.s32 %v25, %v24
    %vm28 = vcmp.lt.s32.totalorder %v26, 16
    %vm29 = vcmp.lt.s32.totalorder %v27, 16
    %vm30 = vcmask 261120
    %v31 = vsel %vm30, %v15, -inf
    %32 = vmax.xlane.f32.xlu0 %v31
    %v33 = vpop.xlane.xlu0 %32
    %v34 = vsel %vm30, %v16, -inf
    %35 = vmax.xlane.f32.xlu0 %v34
    %v36 = vpop.xlane.xlu0 %35
    %v37 = vsub.f32 %v15, %v33
    %v38 = vsub.f32 %v16, %v36
    %v39 = vmul.f32 %v37, 1.442695
    %v40 = vpow.pop %v39
    %v41 = vmul.f32 %v38, 1.442695
    %v42 = vpow.pop %v41
    %v43 = vsel %vm30, %v40, 0.0
    %44 = vadd.xlane.f32.xlu0 %v43
    %v45 = vpop.xlane.xlu0 %44
    %v46 = vsel %vm30, %v42, 0.0
    %47 = vadd.xlane.f32.xlu0 %v46
    %v48 = vpop.xlane.xlu0 %47
    %v49 = vlog2.pop %v45
    %v50 = vmul.f32 %v49, 0.6931472
    %v51 = vlog2.pop %v48
    %v52 = vmul.f32 %v51, 0.6931472
    %v53 = vadd.f32 %v33, %v50
    %v54 = vadd.f32 %v36, %v52
    %v55 = vsel %vm30, %v15, 0.0
    %56 = vadd.xlane.f32.xlu0 %v55
    %v57 = vpop.xlane.xlu0 %56
    %v58 = vsel %vm30, %v16, 0.0
    %59 = vadd.xlane.f32.xlu0 %v58
    %v60 = vpop.xlane.xlu0 %59
    %v61 = vlaneseq
    %v62 = vand.u32 %v61, 127
    %63 = vset.pattern.permute.xlu0 0
    %64 = vperm.xlu0 %63, %v17
    %v65 = vpop.permute.xlu0 %64
    %66 = vset.pattern.permute.xlu0 0
    %67 = vperm.xlu0 %66, %v18
    %v68 = vpop.permute.xlu0 %67
    %vm69 = vcmp.eq.s32.totalorder %v62, %v65
    %vm70 = vcmp.eq.s32.totalorder %v62, %v68
    %v71 = vsel %vm69, %v15, 0.0
    %v72 = vsel %vm70, %v16, 0.0
    %v73 = vsel %vm30, %v71, 0.0
    %74 = vadd.xlane.f32.xlu0 %v73
    %v75 = vpop.xlane.xlu0 %74
    %v76 = vsel %vm30, %v72, 0.0
    %77 = vadd.xlane.f32.xlu0 %v76
    %v78 = vpop.xlane.xlu0 %77
    %v79 = vmul.f32 %v57, 0.003125
    %v80 = vmul.f32 %v60, 0.003125
    %v81 = vsub.f32 %v53, %v79
    %v82 = vsub.f32 %v54, %v80
    %v83 = vmul.f32 %v75, 0.9
    %v84 = vmul.f32 %v78, 0.9
    %v85 = vsub.f32 %v81, %v83
    %v86 = vsub.f32 %v82, %v84
    %v87 = vmul.f32 %v85, %v19
    %v88 = vmul.f32 %v86, %v20
    %v89 = vsel %vm28, %v87, 0.0
    %v90 = vsel %vm29, %v88, 0.0
    %vm91 = vcmask 7168
    %v92 = vsel %vm91, %v89, 0.0
    %v93 = vsel %vm91, %v90, 0.0
    %v94 = vadd.f32 %v92, %v93
    %95 = vadd.xlane.f32.xlu0 %v94
    %v96 = vpop.xlane.xlu0 %95
    %v97 = vrot.slane %v96, 4
    %v98 = vadd.f32 %v96, %v97
    %v99 = vrot.slane %v98, 2
    %v100 = vadd.f32 %v98, %v99
    %v101 = vrot.slane %v100, 1
    %v102 = vadd.f32 %v100, %v101
    %s103 = vtos %v102
    %v104 = vstv %s103
    %vm105 = vcmask 0
    %106 = vst.msk [vmem:[#allocation2] sm:$0x1] %vm105, %v104
    // Predicated region
    $region14: #{tpu_custom_call.1} parent=1 // pred_check
      _
    $region15: #{tpu_custom_call.1} parent=1 // pred_check_branch
      %108 = sbr.rel (0) target = $region17
    $region16: #{tpu_custom_call.1} parent=1 // pred_region
      %s110 = ssub.s32 16, 16
      %111 = vsyncadd [#allocation3], %s110
      %s113 = sshll.u32 [#allocation2], 4
      %s114 = int_to_ptr.vmem [resolvable:$true] %s113
      %116 = dma.vmem_to_hbm [thread:$0]  %s114, 16, %s3, [#allocation3]
    $region17: #{tpu_custom_call.1} parent=1 // pred_fallthru
      _
    // Predicated region
    $region18: #{tpu_custom_call.1} parent=1 // pred_check
      _
    $region19: #{tpu_custom_call.1} parent=1 // pred_check_branch
      %118 = sbr.rel (0) target = $region21
    $region20: #{tpu_custom_call.1} parent=1 // pred_region
      %119 = dma.done [#allocation3], 16
    $region21: #{tpu_custom_call.1} parent=1 // pred_fallthru
      _
    %120 = vsyncpa [#allocation3], 1

</llo_original>
